<compile_context>
chip_gen: v5e
topology: v5e:2x2
jax: 0.10.0
libtpu: 0.0.40
codegen_flags: <defaults>
</compile_context>

<pallas_src>
import functools

import jax
import jax.numpy as jnp
from jax import lax
from jax.experimental import pallas as pl
from jax.experimental.pallas import tpu as pltpu

DIMS = (21, 17, 13, 9, 5)          # layer widths: in -> ... -> out
N_LAYERS = len(DIMS) - 1


def _round_up(n, m):
    return ((n + m - 1) // m) * m


def _cdiv(a, b):
    return -(-a // b)


def _mlp_kernel(x_ref, w1_ref, b1_ref, w2_ref, b2_ref, w3_ref, b3_ref,
                w4_ref, b4_ref, o_ref):
    """x_ref: (tb, 21) natural layout (f32).
    w_i_ref: (out_i, in_i) bf16, b_i_ref: (out_i, 1) f32 -- all VMEM-resident.
    o_ref: (tb, 5) natural layout (f32)."""
    x = x_ref[...]                                          # (tb, 21) f32

    # Layer 1: contract x's feature axis directly (A @ B.T form) so the
    # activations become feature-major (out, tb) with no wrapper transpose.
    # bf16 operands, f32 MXU accumulation (single MXU pass, K is tiny).
    h = lax.dot_general(
        w1_ref[...], x.astype(jnp.bfloat16),
        dimension_numbers=(((1,), (1,)), ((), ())),
        preferred_element_type=jnp.float32)                 # (17, tb)
    h = jnp.maximum(h + b1_ref[...], 0.0)

    # Layers 2..4 stay feature-major: (out_i, in_i) @ (in_i, tb).
    for w_ref, b_ref in ((w2_ref, b2_ref), (w3_ref, b3_ref), (w4_ref, b4_ref)):
        h = jnp.dot(w_ref[...], h.astype(jnp.bfloat16),
                    preferred_element_type=jnp.float32)
        h = jnp.maximum(h + b_ref[...], 0.0)                # (out_i, tb)

    # Softmax over the feature (sublane) axis of the (5, tb) logits slab.
    # Exact normalization (the approx reciprocal broke the 1e-4 tolerance).
    m = jnp.max(h, axis=0, keepdims=True)
    e = jnp.exp(h - m)
    probs = e / jnp.sum(e, axis=0, keepdims=True)           # (5, tb)

    # One small in-kernel transpose (XLU slot, overlapped with MXU work)
    # back to the natural (tb, 5) layout -- no wrapper-side transpose pass.
    o_ref[...] = probs.T.astype(o_ref.dtype)


@functools.partial(jax.jit, static_argnames=("block_b",))
def mlp_forward(x, params, *, block_b=8192):
    """x: (B, 21) float32 (natural batch-major).  Returns (B, 5) softmax probs.

    params: list of (W_i, b_i) with W_i: (out_i, in_i), b_i: (out_i,) float32
    (PyTorch nn.Linear layout)."""
    B, F = x.shape
    assert F == DIMS[0]
    x = x.astype(jnp.float32)

    # --- Balanced batch tiling ---------------------------------------------
    # * tiles are derived from a step count, not round_up(B, tb), so an
    #   awkward B never doubles the padded work;
    # * >= 2 grid steps whenever possible so ("parallel",) can use both
    #   TensorCores on v7x;
    # * tb is sublane-aligned (and lane-aligned once it is >= 128).
    b_al = _round_up(max(B, 1), 8)
    n_steps = _cdiv(b_al, block_b)
    if b_al >= 256:
        n_steps = max(n_steps, 2)
    tb = _round_up(_cdiv(b_al, n_steps), 8)
    if tb >= 128:
        tb = _round_up(tb, 128)
    grid_steps = _cdiv(B, tb)   # a partial final block is masked by Pallas

    # Flatten params: weights stored bf16 (single-pass MXU), biases f32 (out,1).
    flat = []
    for w, b in params:
        flat.append(w.astype(jnp.bfloat16))
        flat.append(b.astype(jnp.float32).reshape(-1, 1))

    # Each parameter is its own full-array block with a constant index_map:
    # DMA'd once, VMEM-resident across the whole grid, never sliced in-kernel.
    param_specs = [pl.BlockSpec(p.shape, lambda i: (0, 0)) for p in flat]

    flops = 2 * grid_steps * tb * sum(DIMS[i] * DIMS[i + 1]
                                      for i in range(N_LAYERS))
    bytes_hbm = 4 * B * (DIMS[0] + DIMS[-1]) + sum(
        p.size * p.dtype.itemsize for p in flat)

    # Scoped VMEM: ~3 KiB per batch column (lane-padded natural-layout x/out
    # blocks dominate).  v5e's 16 MiB default is too small for tb >= 8192, so
    # set the limit explicitly; cap well under v7x's 64 MiB physical VMEM.
    vmem_limit = min(100 * 1024 * 1024,
                     max(32 * 1024 * 1024, 8 * 1024 * 1024 + 4096 * tb))

    return pl.pallas_call(
        _mlp_kernel,
        out_shape=jax.ShapeDtypeStruct((B, DIMS[-1]), jnp.float32),
        grid=(grid_steps,),
        in_specs=[pl.BlockSpec((tb, DIMS[0]), lambda i: (i, 0))] + param_specs,
        out_specs=pl.BlockSpec((tb, DIMS[-1]), lambda i: (i, 0)),
        compiler_params=pltpu.CompilerParams(
            dimension_semantics=("parallel",),
            vmem_limit_bytes=int(vmem_limit),
        ),
        cost_estimate=pl.CostEstimate(
            flops=int(flops),
            transcendentals=int(grid_steps * tb * DIMS[-1]),
            bytes_accessed=int(bytes_hbm),
        ),
    )(x, *flat)


def init_params(key):
    """PyTorch nn.Linear default init: U(-1/sqrt(fan_in), 1/sqrt(fan_in))."""
    params = []
    for i in range(N_LAYERS):
        fan_in, fan_out = DIMS[i], DIMS[i + 1]
        key, kw, kb = jax.random.split(key, 3)
        bound = 1.0 / float(fan_in) ** 0.5
        w = jax.random.uniform(kw, (fan_out, fan_in), jnp.float32,
                               minval=-bound, maxval=bound)
        b = jax.random.uniform(kb, (fan_out,), jnp.float32,
                               minval=-bound, maxval=bound)
        params.append((w, b))
    return params


def _reference_f32(x, params):
    h = x
    for w, b in params:
        h = jnp.maximum(h @ w.T + b, 0.0)
    return jax.nn.softmax(h, axis=-1)


def _reference_bf16(x, params):
    # Same arithmetic as the kernel: bf16 matmul operands, f32 accumulation.
    h = x
    for w, b in params:
        z = lax.dot_general(h.astype(jnp.bfloat16), w.astype(jnp.bfloat16),
                            dimension_numbers=(((1,), (1,)), ((), ())),
                            preferred_element_type=jnp.float32)
        h = jnp.maximum(z + b, 0.0)
    return jax.nn.softmax(h, axis=-1)


if __name__ == "__main__":
    key = jax.random.PRNGKey(0)
    key, kx = jax.random.split(key)
    params = init_params(key)

    # Small demo batch (single exact tile) and a multi-step-grid case.
    for batch, block_b in ((8, 8192), (384, 128)):
        x = jax.random.normal(jax.random.fold_in(kx, batch),
                              (batch, DIMS[0]), dtype=jnp.float32)

        out = jax.block_until_ready(mlp_forward(x, params, block_b=block_b))
        assert out.shape == (batch, DIMS[-1])

        ref16 = _reference_bf16(x, params)   # matches kernel arithmetic
        ref32 = _reference_f32(x, params)    # exact f32 / PyTorch parity

        assert jnp.allclose(out, ref16, atol=1e-4, rtol=1e-4), \
            "mismatch vs bf16-matmul reference"
        assert jnp.allclose(out, ref32, atol=5e-3, rtol=5e-2), \
            "mismatch vs f32 reference"
        assert jnp.allclose(jnp.sum(out, axis=-1), 1.0, atol=1e-5), \
            "softmax rows must sum to 1"

    print("KERNEL_OK")
</pallas_src>

<mosaic_0001>
module attributes {stable_mosaic.version = 11 : i64} {
  func.func @_mlp_kernel(%arg0: i32, %arg1: memref<8x21xf32, #tpu.memory_space<vmem>>, %arg2: memref<17x21xbf16, #tpu.memory_space<vmem>>, %arg3: memref<17x1xf32, #tpu.memory_space<vmem>>, %arg4: memref<13x17xbf16, #tpu.memory_space<vmem>>, %arg5: memref<13x1xf32, #tpu.memory_space<vmem>>, %arg6: memref<9x13xbf16, #tpu.memory_space<vmem>>, %arg7: memref<9x1xf32, #tpu.memory_space<vmem>>, %arg8: memref<5x9xbf16, #tpu.memory_space<vmem>>, %arg9: memref<5x1xf32, #tpu.memory_space<vmem>>, %arg10: memref<8x5xf32, #tpu.memory_space<vmem>>) attributes {dimension_semantics = [#tpu.dimension_semantics<parallel>], iteration_bounds = array<i64: 1>, scalar_prefetch = 0 : i64, scratch_operands = 0 : i64, tpu.core_type = #tpu.core_type<tc>, window_params = [{transform_indices = @transform_0, window_bounds = array<i64: 8, 21>}, {pipeline_mode = #tpu.pipeline_mode<synchronous>, transform_indices = @transform_1, window_bounds = array<i64: 17, 21>}, {pipeline_mode = #tpu.pipeline_mode<synchronous>, transform_indices = @transform_2, window_bounds = array<i64: 17, 1>}, {pipeline_mode = #tpu.pipeline_mode<synchronous>, transform_indices = @transform_3, window_bounds = array<i64: 13, 17>}, {pipeline_mode = #tpu.pipeline_mode<synchronous>, transform_indices = @transform_4, window_bounds = array<i64: 13, 1>}, {pipeline_mode = #tpu.pipeline_mode<synchronous>, transform_indices = @transform_5, window_bounds = array<i64: 9, 13>}, {pipeline_mode = #tpu.pipeline_mode<synchronous>, transform_indices = @transform_6, window_bounds = array<i64: 9, 1>}, {pipeline_mode = #tpu.pipeline_mode<synchronous>, transform_indices = @transform_7, window_bounds = array<i64: 5, 9>}, {pipeline_mode = #tpu.pipeline_mode<synchronous>, transform_indices = @transform_8, window_bounds = array<i64: 5, 1>}, {transform_indices = @transform_9, window_bounds = array<i64: 8, 5>}]} {
    %c0 = arith.constant 0 : index
    %c0_0 = arith.constant 0 : index
    %0 = vector.load %arg1[%c0, %c0_0] : memref<8x21xf32, #tpu.memory_space<vmem>>, vector<8x21xf32>
    %c0_1 = arith.constant 0 : index
    %c0_2 = arith.constant 0 : index
    %1 = vector.load %arg2[%c0_1, %c0_2] : memref<17x21xbf16, #tpu.memory_space<vmem>>, vector<17x21xbf16>
    %2 = arith.truncf %0 : vector<8x21xf32> to vector<8x21xbf16>
    %cst = arith.constant dense<0.000000e+00> : vector<17x8xf32>
    %3 = tpu.matmul %1, %2, %cst {dimension_numbers = #tpu.dot_dimension_numbers<[1], [1], [0], [0], [0, 0, 1, 0], [], []>} : vector<17x21xbf16>, vector<8x21xbf16>, vector<17x8xf32> -> vector<17x8xf32>
    %c0_3 = arith.constant 0 : index
    %c0_4 = arith.constant 0 : index
    %4 = vector.load %arg3[%c0_3, %c0_4] : memref<17x1xf32, #tpu.memory_space<vmem>>, vector<17x1xf32>
    %5 = vector.broadcast %4 : vector<17x1xf32> to vector<17x8xf32>
    %6 = arith.addf %3, %5 : vector<17x8xf32>
    %cst_5 = arith.constant 0.000000e+00 : f32
    %7 = vector.broadcast %cst_5 : f32 to vector<17x8xf32>
    %8 = arith.maximumf %6, %7 : vector<17x8xf32>
    %c0_6 = arith.constant 0 : index
    %c0_7 = arith.constant 0 : index
    %9 = vector.load %arg4[%c0_6, %c0_7] : memref<13x17xbf16, #tpu.memory_space<vmem>>, vector<13x17xbf16>
    %10 = arith.truncf %8 : vector<17x8xf32> to vector<17x8xbf16>
    %cst_8 = arith.constant dense<0.000000e+00> : vector<13x8xf32>
    %11 = tpu.matmul %9, %10, %cst_8 {dimension_numbers = #tpu.dot_dimension_numbers<[1], [0], [0], [1], [0, 0, 1, 1], [], []>} : vector<13x17xbf16>, vector<17x8xbf16>, vector<13x8xf32> -> vector<13x8xf32>
    %c0_9 = arith.constant 0 : index
    %c0_10 = arith.constant 0 : index
    %12 = vector.load %arg5[%c0_9, %c0_10] : memref<13x1xf32, #tpu.memory_space<vmem>>, vector<13x1xf32>
    %13 = vector.broadcast %12 : vector<13x1xf32> to vector<13x8xf32>
    %14 = arith.addf %11, %13 : vector<13x8xf32>
    %cst_11 = arith.constant 0.000000e+00 : f32
    %15 = vector.broadcast %cst_11 : f32 to vector<13x8xf32>
    %16 = arith.maximumf %14, %15 : vector<13x8xf32>
    %c0_12 = arith.constant 0 : index
    %c0_13 = arith.constant 0 : index
    %17 = vector.load %arg6[%c0_12, %c0_13] : memref<9x13xbf16, #tpu.memory_space<vmem>>, vector<9x13xbf16>
    %18 = arith.truncf %16 : vector<13x8xf32> to vector<13x8xbf16>
    %cst_14 = arith.constant dense<0.000000e+00> : vector<9x8xf32>
    %19 = tpu.matmul %17, %18, %cst_14 {dimension_numbers = #tpu.dot_dimension_numbers<[1], [0], [0], [1], [0, 0, 1, 1], [], []>} : vector<9x13xbf16>, vector<13x8xbf16>, vector<9x8xf32> -> vector<9x8xf32>
    %c0_15 = arith.constant 0 : index
    %c0_16 = arith.constant 0 : index
    %20 = vector.load %arg7[%c0_15, %c0_16] : memref<9x1xf32, #tpu.memory_space<vmem>>, vector<9x1xf32>
    %21 = vector.broadcast %20 : vector<9x1xf32> to vector<9x8xf32>
    %22 = arith.addf %19, %21 : vector<9x8xf32>
    %cst_17 = arith.constant 0.000000e+00 : f32
    %23 = vector.broadcast %cst_17 : f32 to vector<9x8xf32>
    %24 = arith.maximumf %22, %23 : vector<9x8xf32>
    %c0_18 = arith.constant 0 : index
    %c0_19 = arith.constant 0 : index
    %25 = vector.load %arg8[%c0_18, %c0_19] : memref<5x9xbf16, #tpu.memory_space<vmem>>, vector<5x9xbf16>
    %26 = arith.truncf %24 : vector<9x8xf32> to vector<9x8xbf16>
    %cst_20 = arith.constant dense<0.000000e+00> : vector<5x8xf32>
    %27 = tpu.matmul %25, %26, %cst_20 {dimension_numbers = #tpu.dot_dimension_numbers<[1], [0], [0], [1], [0, 0, 1, 1], [], []>} : vector<5x9xbf16>, vector<9x8xbf16>, vector<5x8xf32> -> vector<5x8xf32>
    %c0_21 = arith.constant 0 : index
    %c0_22 = arith.constant 0 : index
    %28 = vector.load %arg9[%c0_21, %c0_22] : memref<5x1xf32, #tpu.memory_space<vmem>>, vector<5x1xf32>
    %29 = vector.broadcast %28 : vector<5x1xf32> to vector<5x8xf32>
    %30 = arith.addf %27, %29 : vector<5x8xf32>
    %cst_23 = arith.constant 0.000000e+00 : f32
    %31 = vector.broadcast %cst_23 : f32 to vector<5x8xf32>
    %32 = arith.maximumf %30, %31 : vector<5x8xf32>
    %cst_24 = arith.constant dense<0xFF800000> : vector<8xf32>
    %33 = vector.multi_reduction <maximumf>, %32, %cst_24 [0] : vector<5x8xf32> to vector<8xf32>
    %34 = vector.shape_cast %33 : vector<8xf32> to vector<1x8xf32>
    %35 = vector.broadcast %34 : vector<1x8xf32> to vector<5x8xf32>
    %36 = arith.subf %32, %35 : vector<5x8xf32>
    %37 = math.exp %36 : vector<5x8xf32>
    %cst_25 = arith.constant dense<0.000000e+00> : vector<8xf32>
    %38 = vector.multi_reduction <add>, %37, %cst_25 [0] : vector<5x8xf32> to vector<8xf32>
    %39 = vector.shape_cast %38 : vector<8xf32> to vector<1x8xf32>
    %40 = vector.broadcast %39 : vector<1x8xf32> to vector<5x8xf32>
    %41 = arith.divf %37, %40 : vector<5x8xf32>
    %42 = tpu.transpose %41, [1, 0] : vector<5x8xf32> -> vector<8x5xf32>
    %c0_26 = arith.constant 0 : index
    %c0_27 = arith.constant 0 : index
    %43 = vector.load %arg10[%c0_26, %c0_27] : memref<8x5xf32, #tpu.memory_space<vmem>>, vector<8x5xf32>
    tpu.vector_store %arg10[%c0_26, %c0_27], %42 {strides = array<i32>} : memref<8x5xf32, #tpu.memory_space<vmem>>, vector<8x5xf32>,
    return
  }
  func.func @transform_0(%arg0: i32) -> (i32, i32) {
    %c0_i32 = arith.constant 0 : i32
    %c0_i32_0 = arith.constant 0 : i32
    return %arg0, %c0_i32 : i32, i32
  }
  func.func @transform_1(%arg0: i32) -> (i32, i32) {
    %c0_i32 = arith.constant 0 : i32
    %c0_i32_0 = arith.constant 0 : i32
    %c0_i32_1 = arith.constant 0 : i32
    return %c0_i32, %c0_i32_0 : i32, i32
  }
  func.func @transform_2(%arg0: i32) -> (i32, i32) {
    %c0_i32 = arith.constant 0 : i32
    %c0_i32_0 = arith.constant 0 : i32
    %c0_i32_1 = arith.constant 0 : i32
    return %c0_i32, %c0_i32_0 : i32, i32
  }
  func.func @transform_3(%arg0: i32) -> (i32, i32) {
    %c0_i32 = arith.constant 0 : i32
    %c0_i32_0 = arith.constant 0 : i32
    %c0_i32_1 = arith.constant 0 : i32
    return %c0_i32, %c0_i32_0 : i32, i32
  }
  func.func @transform_4(%arg0: i32) -> (i32, i32) {
    %c0_i32 = arith.constant 0 : i32
    %c0_i32_0 = arith.constant 0 : i32
    %c0_i32_1 = arith.constant 0 : i32
    return %c0_i32, %c0_i32_0 : i32, i32
  }
  func.func @transform_5(%arg0: i32) -> (i32, i32) {
    %c0_i32 = arith.constant 0 : i32
    %c0_i32_0 = arith.constant 0 : i32
    %c0_i32_1 = arith.constant 0 : i32
    return %c0_i32, %c0_i32_0 : i32, i32
  }
  func.func @transform_6(%arg0: i32) -> (i32, i32) {
    %c0_i32 = arith.constant 0 : i32
    %c0_i32_0 = arith.constant 0 : i32
    %c0_i32_1 = arith.constant 0 : i32
    return %c0_i32, %c0_i32_0 : i32, i32
  }
  func.func @transform_7(%arg0: i32) -> (i32, i32) {
    %c0_i32 = arith.constant 0 : i32
    %c0_i32_0 = arith.constant 0 : i32
    %c0_i32_1 = arith.constant 0 : i32
    return %c0_i32, %c0_i32_0 : i32, i32
  }
  func.func @transform_8(%arg0: i32) -> (i32, i32) {
    %c0_i32 = arith.constant 0 : i32
    %c0_i32_0 = arith.constant 0 : i32
    %c0_i32_1 = arith.constant 0 : i32
    return %c0_i32, %c0_i32_0 : i32, i32
  }
  func.func @transform_9(%arg0: i32) -> (i32, i32) {
    %c0_i32 = arith.constant 0 : i32
    %c0_i32_0 = arith.constant 0 : i32
    return %arg0, %c0_i32 : i32, i32
  }
}

</mosaic_0001>

<llo_original>
// kernel: mlp_forward.1
$region0: #{mlp_forward.1}
  #allocation0 [shape = 'u32[]', space=smem, size = 0x4, offset = 0x4, fixed_abs, tag = 'smem constant byte address 0x4 - core index']
  #allocation1 [shape = 'u32[72,128]{1,0:T(1,128)}', space=vmem, size = 0x9000, scoped, tag = 'internal scratch']
  %s0 = inlined_call_operand.vmem [shape: f32[8,21], index: 0, kind: input, shape index: {}]
  %s1 = inlined_call_operand.vmem [shape: bf16[17,21], index: 1, kind: input, shape index: {}]
  %s2 = inlined_call_operand.vmem [shape: f32[17,1], index: 2, kind: input, shape index: {}]
  %s3 = inlined_call_operand.vmem [shape: bf16[13,17], index: 3, kind: input, shape index: {}]
  %s4 = inlined_call_operand.vmem [shape: f32[13,1], index: 4, kind: input, shape index: {}]
  %s5 = inlined_call_operand.vmem [shape: bf16[9,13], index: 5, kind: input, shape index: {}]
  %s6 = inlined_call_operand.vmem [shape: f32[9,1], index: 6, kind: input, shape index: {}]
  %s7 = inlined_call_operand.vmem [shape: bf16[5,9], index: 7, kind: input, shape index: {}]
  %s8 = inlined_call_operand.vmem [shape: f32[5,1], index: 8, kind: input, shape index: {}]
  %s9 = inlined_call_operand.hbm [shape: f32[8,5], index: 9, kind: output, shape index: {}]
  %s10 = sld [smem:[#allocation0]]
  $region46: #{mlp_forward.1} parent=0
    _
  %s12 = ssub.s32 1, %s10
  %s13 = scalar_select 0, %s12, %s10
  $region1: #{mlp_forward.1} parent=0
    #allocation2 [shape = 'u8[4096]{0}', space=vmem, size = 0x1000, scoped, tag = 'output window, operand 0, single buffered']
    #allocation3 [shape = 's32[1]{0}', space=sflag, size = 0x4, scoped, tag = 'scoped memory for mlp_forward.1']
    %14 = vsyncpa [#allocation3], 0
    // Predicated region
    $region2: #{mlp_forward.1} parent=1 // pred_check
      _
    $region3: #{mlp_forward.1} parent=1 // pred_check_branch
      %16 = sbr.rel (0) target = $region5
    $region4: #{mlp_forward.1} parent=1 // pred_region
      _
    $region5: #{mlp_forward.1} parent=1 // pred_fallthru
      _
    // Predicated region
    $region6: #{mlp_forward.1} parent=1 // pred_check
      _
    $region7: #{mlp_forward.1} parent=1 // pred_check_branch
      %18 = sbr.rel (0) target = $region9
    $region8: #{mlp_forward.1} parent=1 // pred_region
      _
    $region9: #{mlp_forward.1} parent=1 // pred_fallthru
      _
    // Predicated region
    $region10: #{mlp_forward.1} parent=1 // pred_check
      _
    $region11: #{mlp_forward.1} parent=1 // pred_check_branch
      %20 = sbr.rel (0) target = $region13
    $region12: #{mlp_forward.1} parent=1 // pred_region
      _
    $region13: #{mlp_forward.1} parent=1 // pred_fallthru
      _
    // Predicated region
    $region14: #{mlp_forward.1} parent=1 // pred_check
      _
    $region15: #{mlp_forward.1} parent=1 // pred_check_branch
      %22 = sbr.rel (0) target = $region17
    $region16: #{mlp_forward.1} parent=1 // pred_region
      _
    $region17: #{mlp_forward.1} parent=1 // pred_fallthru
      _
    // Predicated region
    $region18: #{mlp_forward.1} parent=1 // pred_check
      _
    $region19: #{mlp_forward.1} parent=1 // pred_check_branch
      %24 = sbr.rel (0) target = $region21
    $region20: #{mlp_forward.1} parent=1 // pred_region
      _
    $region21: #{mlp_forward.1} parent=1 // pred_fallthru
      _
    // Predicated region
    $region22: #{mlp_forward.1} parent=1 // pred_check
      _
    $region23: #{mlp_forward.1} parent=1 // pred_check_branch
      %26 = sbr.rel (0) target = $region25
    $region24: #{mlp_forward.1} parent=1 // pred_region
      _
    $region25: #{mlp_forward.1} parent=1 // pred_fallthru
      _
    // Predicated region
    $region26: #{mlp_forward.1} parent=1 // pred_check
      _
    $region27: #{mlp_forward.1} parent=1 // pred_check_branch
      %28 = sbr.rel (0) target = $region29
    $region28: #{mlp_forward.1} parent=1 // pred_region
      _
    $region29: #{mlp_forward.1} parent=1 // pred_fallthru
      _
    // Predicated region
    $region30: #{mlp_forward.1} parent=1 // pred_check
      _
    $region31: #{mlp_forward.1} parent=1 // pred_check_branch
      %30 = sbr.rel (0) target = $region33
    $region32: #{mlp_forward.1} parent=1 // pred_region
      _
    $region33: #{mlp_forward.1} parent=1 // pred_fallthru
      _
    // Predicated region
    $region34: #{mlp_forward.1} parent=1 // pred_check
      _
    $region35: #{mlp_forward.1} parent=1 // pred_check_branch
      %32 = sbr.rel (0) target = $region37
    $region36: #{mlp_forward.1} parent=1 // pred_region
      _
    $region37: #{mlp_forward.1} parent=1 // pred_fallthru
      _
    %v34 = vld [vmem:[%s0] sm:$0xff]
    %v35 = vld [vmem:[%s1] sm:$0xf]
    %v36 = vld [vmem:[%s1 + $0x4] sm:$0xf]
    %v37 = vld [vmem:[%s1 + $0x8] sm:$0x1]
    %v38 = vpack.c.bf16 %v34, %v34
    %v39 = vld [vmem:[%s2] sm:$0xff]
    %v40 = vld [vmem:[%s2 + $0x8] sm:$0xff]
    %v41 = vld [vmem:[%s2 + $0x10] sm:$0x1]
    %43 = vset.pattern.permute.xlu0 0
    %44 = vperm.xlu0 %43, %v39
    %v45 = vpop.permute.xlu0 %44
    %48 = vset.pattern.permute.xlu0 0
    %49 = vperm.xlu0 %48, %v40
    %v50 = vpop.permute.xlu0 %49
    %53 = vset.pattern.permute.xlu0 0
    %54 = vperm.xlu0 %53, %v41
    %v55 = vpop.permute.xlu0 %54
    %v60 = vunpack.c.l.b16 %v35
    %v61 = vunpack.c.l.b16 %v36
    %v62 = vunpack.c.l.b16 %v37
    %v63 = vpack.c.b16 %v61, %v60
    %v64 = vpack.c.b16 %v62, %v62
    %vm65 = vcmask 171008
    %v67 = vsel %vm65, %v63, 0
    %v70 = vsel %vm65, %v64, 0
    %v73 = vsel %vm65, %v38, 0
    %75 = vmatpush.bf16.xpose.msra.mxu0 0
    %76 = vmatpush.bf16.xpose.msra.mxu0 0
    %77 = vmatpush.bf16.xpose.msra.mxu0 0
    %78 = vmatpush.bf16.xpose.msra.mxu0 0
    %79 = vmatpush.bf16.xpose.msra.mxu0 0
    %80 = vmatpush.bf16.xpose.msra.mxu0 0
    %81 = vmatpush.bf16.xpose.msra.mxu0 0
    %82 = vmatpush.bf16.xpose.msra.mxu0 %v73
    %83 = vmatmul.bf16.gmra.mxu0 %v67
    %v84 = vpop.f32.mrf.mxu0
    %v85 = vadd.f32 %v45, %v84
    %v86 = vpop.f32.mrf.mxu0
    %v87 = vadd.f32 %v50, %v86
    %88 = vmatmul.bf16.gmra.mxu0 %v70
    %v89 = vpop.f32.mrf.mxu0
    %v90 = vadd.f32 %v55, %v89
    %v91 = vpop.f32.mrf.mxu0
    %92 = vdwg.mxu0
    %v93 = vmax.f32 %v85, 0.0
    %v94 = vmax.f32 %v87, 0.0
    %v95 = vmax.f32 %v90, 0.0
    %v96 = vld [vmem:[%s3] sm:$0xf]
    %v97 = vld [vmem:[%s3 + $0x4] sm:$0x7]
    %v98 = vpack.c.bf16 %v94, %v93
    %v99 = vpack.c.bf16 %v95, %v95
    %v100 = vld [vmem:[%s4] sm:$0xff]
    %v101 = vld [vmem:[%s4 + $0x8] sm:$0x1f]
    %103 = vset.pattern.permute.xlu0 0
    %104 = vperm.xlu0 %103, %v100
    %v105 = vpop.permute.xlu0 %104
    %108 = vset.pattern.permute.xlu0 0
    %109 = vperm.xlu0 %108, %v101
    %v110 = vpop.permute.xlu0 %109
    %v114 = vunpack.c.l.b16 %v96
    %v115 = vunpack.c.l.b16 %v97
    %v116 = vpack.c.b16 %v115, %v114
    %vm117 = vcmask 138240
    %v119 = vsel %vm117, %v116, 0
    %vm121 = vcmask 1040384
    %v122 = vsel 0, 4294967295, 65535
    %v123 = vsel %vm121, %v122, 0
    %v125 = vand.u32 %v99, %v123
    %127 = vmatpush.bf16.msra.mxu0 0
    %128 = vmatpush.bf16.msra.mxu0 0
    %129 = vmatpush.bf16.msra.mxu0 0
    %130 = vmatpush.bf16.msra.mxu0 0
    %131 = vmatpush.bf16.msra.mxu0 0
    %132 = vmatpush.bf16.msra.mxu0 0
    %133 = vmatpush.bf16.msra.mxu0 %v125
    %134 = vmatpush.bf16.msra.mxu0 %v98
    %135 = vmatmul.bf16.gmra.mxu0 %v119
    %v136 = vpop.f32.mrf.mxu0
    %v137 = vadd.f32 %v105, %v136
    %v138 = vpop.f32.mrf.mxu0
    %v139 = vadd.f32 %v110, %v138
    %140 = vdwg.mxu0
    %v141 = vmax.f32 %v137, 0.0
    %v142 = vmax.f32 %v139, 0.0
    %v143 = vld [vmem:[%s5] sm:$0xf]
    %v144 = vld [vmem:[%s5 + $0x4] sm:$0x1]
    %v145 = vpack.c.bf16 %v142, %v141
    %v146 = vld [vmem:[%s6] sm:$0xff]
    %v147 = vld [vmem:[%s6 + $0x8] sm:$0x1]
    %149 = vset.pattern.permute.xlu0 0
    %150 = vperm.xlu0 %149, %v146
    %v151 = vpop.permute.xlu0 %150
    %154 = vset.pattern.permute.xlu0 0
    %155 = vperm.xlu0 %154, %v147
    %v156 = vpop.permute.xlu0 %155
    %v160 = vunpack.c.l.b16 %v143
    %v161 = vunpack.c.l.b16 %v144
    %v162 = vpack.c.b16 %v161, %v160
    %vm163 = vcmask 105472
    %v165 = vsel %vm163, %v162, 0
    %vm167 = vcmask 1045504
    %vm168 = vcmask 1046528
    %v169 = vsel %vm167, 4294967295, 65535
    %v170 = vsel %vm168, %v169, 0
    %v172 = vand.u32 %v145, %v170
    %174 = vmatpush.bf16.msra.mxu0 0
    %175 = vmatpush.bf16.msra.mxu0 0
    %176 = vmatpush.bf16.msra.mxu0 0
    %177 = vmatpush.bf16.msra.mxu0 0
    %178 = vmatpush.bf16.msra.mxu0 0
    %179 = vmatpush.bf16.msra.mxu0 0
    %180 = vmatpush.bf16.msra.mxu0 0
    %181 = vmatpush.bf16.msra.mxu0 %v172
    %182 = vmatmul.bf16.gmra.mxu0 %v165
    %v183 = vpop.f32.mrf.mxu0
    %v184 = vadd.f32 %v151, %v183
    %v185 = vpop.f32.mrf.mxu0
    %v186 = vadd.f32 %v156, %v185
    %187 = vdwg.mxu0
    %v188 = vmax.f32 %v184, 0.0
    %v189 = vmax.f32 %v186, 0.0
    %v190 = vld [vmem:[%s7] sm:$0x7]
    %v191 = vpack.c.bf16 %v189, %v188
    %v192 = vld [vmem:[%s8] sm:$0x1f]
    %194 = vset.pattern.permute.xlu0 0
    %195 = vperm.xlu0 %194, %v192
    %v196 = vpop.permute.xlu0 %195
    %vm198 = vcmask 72704
    %v200 = vsel %vm198, %v190, 0
    %vm202 = vcmask 1043456
    %vm203 = vcmask 1044480
    %v204 = vsel %vm202, 4294967295, 65535
    %v205 = vsel %vm203, %v204, 0
    %v207 = vand.u32 %v191, %v205
    %209 = vmatpush.bf16.msra.mxu0 0
    %210 = vmatpush.bf16.msra.mxu0 0
    %211 = vmatpush.bf16.msra.mxu0 0
    %212 = vmatpush.bf16.msra.mxu0 0
    %213 = vmatpush.bf16.msra.mxu0 0
    %214 = vmatpush.bf16.msra.mxu0 0
    %215 = vmatpush.bf16.msra.mxu0 0
    %216 = vmatpush.bf16.msra.mxu0 %v207
    %217 = vmatmul.bf16.gmra.mxu0 %v200
    %v218 = vpop.f32.mrf.mxu0
    %v219 = vadd.f32 %v196, %v218
    %v220 = vpop.f32.mrf.mxu0
    %221 = vdwg.mxu0
    %v222 = vmax.f32 %v219, 0.0
    %vm223 = vcmask 61440
    %v224 = vsel %vm223, %v222, -inf
    %v225 = vrot.slane %v224, 4
    %v226 = vmax.f32 %v224, %v225
    %v227 = vrot.slane %v226, 2
    %v228 = vmax.f32 %v226, %v227
    %v229 = vrot.slane %v228, 1
    %v230 = vmax.f32 %v228, %v229
    %v231 = vsub.f32 %v222, %v230
    %v232 = vmul.f32 %v231, 1.442695
    %v233 = vpow.pop %v232
    %v234 = vsel %vm223, %v233, 0.0
    %v235 = vrot.slane %v234, 4
    %v236 = vadd.f32 %v234, %v235
    %v237 = vrot.slane %v236, 2
    %v238 = vadd.f32 %v236, %v237
    %v239 = vrot.slane %v238, 1
    %v240 = vadd.f32 %v238, %v239
    %v241 = vrcp.pop %v240
    %v242 = vmul.f32 %v240, %v241
    %v243 = vsub.f32 1.0, %v242
    %v244 = vmul.f32 %v241, %v243
    %v245 = vadd.f32 %v241, %v244
    %vm246 = vweird.f32 %v240
    %vm247 = vweird.f32 %v241
    %vm248 = vmor %vm246, %vm247
    %v249 = vsel %vm248, %v241, %v245
    %v250 = vand.u32 2147483647, %v240
    %vm251 = vcmp.eq.f32.partialorder %v250, 8.507059e+37
    %v252 = vand.u32 %v240, 2147483648
    %v253 = vor.u32 1.1754944e-38, %v252
    %v254 = vsel %vm251, %v253, %v249
    %v255 = vmul.f32 %v233, %v254
    %256 = vxpose.xlu0.b32.start [1/16] %v255, 128
    %257 = vxpose.xlu0.b32.cont [2/16] 0.0, 128
    %258 = vxpose.xlu0.b32.cont [3/16] 0.0, 128
    %259 = vxpose.xlu0.b32.cont [4/16] 0.0, 128
    %260 = vxpose.xlu0.b32.cont [5/16] 0.0, 128
    %261 = vxpose.xlu0.b32.cont [6/16] 0.0, 128
    %262 = vxpose.xlu0.b32.cont [7/16] 0.0, 128
    %263 = vxpose.xlu0.b32.cont [8/16] 0.0, 128
    %264 = vxpose.xlu0.b32.cont [9/16] 0.0, 128
    %265 = vxpose.xlu0.b32.cont [10/16] 0.0, 128
    %266 = vxpose.xlu0.b32.cont [11/16] 0.0, 128
    %267 = vxpose.xlu0.b32.cont [12/16] 0.0, 128
    %268 = vxpose.xlu0.b32.cont [13/16] 0.0, 128
    %269 = vxpose.xlu0.b32.cont [14/16] 0.0, 128
    %270 = vxpose.xlu0.b32.cont [15/16] 0.0, 128
    %271 = vxpose.xlu0.b32.end [16/16] 0.0, 128
    %v272 = vpop.trf.xlu0
    %v273 = vpop.trf.xlu0
    %v274 = vpop.trf.xlu0
    %v275 = vpop.trf.xlu0
    %v276 = vpop.trf.xlu0
    %v277 = vpop.trf.xlu0
    %v278 = vpop.trf.xlu0
    %v279 = vpop.trf.xlu0
    %v280 = vpop.trf.xlu0
    %v281 = vpop.trf.xlu0
    %v282 = vpop.trf.xlu0
    %v283 = vpop.trf.xlu0
    %v284 = vpop.trf.xlu0
    %v285 = vpop.trf.xlu0
    %v286 = vpop.trf.xlu0
    %v287 = vpop.trf.xlu0
    %vm288 = vcmask 39936
    %289 = vst.msk [vmem:[#allocation2] sm:$0xff] %vm288, %v272
    // Predicated region
    $region38: #{mlp_forward.1} parent=1 // pred_check
      _
    $region39: #{mlp_forward.1} parent=1 // pred_check_branch
      %291 = sbr.rel (0) target = $region41
    $region40: #{mlp_forward.1} parent=1 // pred_region
      %293 = vsyncadd [#allocation3], 0
      %s295 = sshll.u32 [#allocation2], 4
      %s296 = int_to_ptr.vmem [resolvable:$true] %s295
      %s297 = sshll.u32 %s9, 4
      %s298 = int_to_ptr.hbm [resolvable:$true] %s297
      %300 = dma.vmem_to_hbm [thread:$0]  %s296, 128, %s298, [#allocation3]
    $region41: #{mlp_forward.1} parent=1 // pred_fallthru
      _
    // Predicated region
    $region42: #{mlp_forward.1} parent=1 // pred_check
      _
    $region43: #{mlp_forward.1} parent=1 // pred_check_branch
      %302 = sbr.rel (0) target = $region45
    $region44: #{mlp_forward.1} parent=1 // pred_region
      %304 = dma.done [#allocation3], 128
    $region45: #{mlp_forward.1} parent=1 // pred_fallthru
      _
    %305 = vsyncpa [#allocation3], 1

</llo_original>
